<compile_context>
chip_gen: v6e
topology: v6e:2x2x1
jax: 0.10.0
libtpu: 0.0.40
codegen_flags: <defaults>
</compile_context>

<pallas_src>
import numpy as np
import jax
import jax.numpy as jnp
from jax import lax
from jax.experimental import pallas as pl
from jax.experimental.pallas import tpu as pltpu


def _make_eca_kernel(Wp, NFLAT, ROWS):
    # Static lane shifts for the 9 taps of a 3x3, pad=1 conv in padded-flat
    # coords: out[p] = sum_t w_t * src[p + shift_t] for every interior lane p.
    tap_shifts = [(kh - 1) * Wp + (kw - 1) for kh in range(3) for kw in range(3)]

    def shift_lanes(v, s):
        # out[:, p] = v[:, (p + s) mod NFLAT]. Interior lanes never wrap (see
        # static asserts in make_eca_forward); wrapped values only land on
        # border/tail lanes that get masked or multiplied by x == 0.
        if s == 0:
            return v
        return pltpu.roll(v, shift=(-s) % NFLAT, axis=1)     # single XLU rotate

    def kernel(x_ref, mask_ref, w1_ref, b1_ref, w2_ref, b2_ref, out_ref):
        x = x_ref[...]                        # (CP, NFLAT) f32 padded-flat image(s)
        mask = mask_ref[...]                  # (1,  NFLAT) f32, 1.0 on interior lanes

        def conv3x3_lrelu(src, w_ref, b_ref):
            # im2col: stacked[t*CP + ci, p] = src[ci, p + shift_t]
            stacked = jnp.concatenate(
                [shift_lanes(src, s) for s in tap_shifts], axis=0)   # (9*CP, NFLAT)
            y = jnp.dot(w_ref[...], stacked.astype(jnp.bfloat16),    # bf16 MXU path
                        preferred_element_type=jnp.float32)
            y = y + b_ref[...]
            return jnp.where(y >= 0, y, 0.2 * y)                     # LeakyReLU(0.2)

        # y1 needs its border/tail re-zeroed so conv #2 sees proper zero padding.
        y1 = conv3x3_lrelu(x, w1_ref, b1_ref) * mask
        # y2's border/tail garbage is killed by x == 0 in the final product.
        y2 = conv3x3_lrelu(y1, w2_ref, b2_ref)
        out_ref[...] = (jax.nn.sigmoid(y2) * x)[:ROWS, :]

    return kernel


def _choose_fold(B, C, CP):
    """Images packed per sublane block.

    v5e/v6e have a single TensorCore, so a multi-step grid is a serial loop with
    ~0.35 us/step overhead -> fold the batch into the unused channel padding.
    v7x has 2 TensorCores -> keep one image per grid step ("parallel" grid).
    """
    try:
        kind = jax.devices()[0].device_kind.lower()
    except Exception:
        kind = ""
    if "v7" in kind:
        return 1
    fold = max(1, min(B, CP // C))
    while fold > 1 and B % fold:
        fold -= 1
    return fold


def make_eca_forward(B, C, H, W, w1, b1, w2, b2):
    """Packs weights once and returns a jitted fn x:(B,C,H,W) -> (B,C,H,W)."""
    Hp, Wp = H + 2, W + 2
    NPAD = Hp * Wp
    CP = max(8, -(-C // 8) * 8)                  # channels padded to full sublanes
    NFLAT = -(-NPAD // 128) * 128                # lanes padded to whole vregs
    fold = _choose_fold(B, C, CP)
    NB, ROWS = B // fold, fold * C

    # Interior lanes never read a wrapped value: max |tap shift| = Wp + 1.
    assert (Wp + 1) - (Wp + 1) >= 0              # min interior lane - max shift >= 0
    assert (H * Wp + W) + (Wp + 1) < NFLAT       # max interior lane + max shift in-range

    # ---- one-time packing (hoisted out of the per-call jitted path) ----
    def pack_w(w):
        # (3,3,Cin,Cout) HWIO -> (CP, 9*CP) bf16, block-diagonal over folded
        # images: wp[g*C+co, t*CP + g*C+ci] = w[kh, kw, ci, co], t = kh*3 + kw.
        w = np.asarray(w, np.float32)
        wp = np.zeros((CP, 9, CP), np.float32)
        for t in range(9):
            kh, kw = divmod(t, 3)
            for g in range(fold):
                o = g * C
                wp[o:o + C, t, o:o + C] = w[kh, kw].T    # [co, ci]
        return jnp.asarray(wp.reshape(CP, 9 * CP), jnp.bfloat16)

    def pack_b(b):
        bp = np.zeros((CP, 1), np.float32)
        for g in range(fold):
            bp[g * C:(g + 1) * C, 0] = np.asarray(b, np.float32)
        return jnp.asarray(bp)

    w1p, b1p, w2p, b2p = pack_w(w1), pack_b(b1), pack_w(w2), pack_b(b2)

    # Interior mask over the padded-flat lane axis (1.0 inside the HxW image).
    lane = np.arange(NFLAT)
    r, c = lane // Wp, lane % Wp
    interior = (lane < NPAD) & (r >= 1) & (r <= H) & (c >= 1) & (c <= W)
    mask = jnp.asarray(interior.astype(np.float32).reshape(1, NFLAT))

    kernel = _make_eca_kernel(Wp, NFLAT, ROWS)

    call = pl.pallas_call(
        kernel,
        out_shape=jax.ShapeDtypeStruct((NB, ROWS, NFLAT), jnp.float32),
        grid=(NB,),
        in_specs=[
            pl.BlockSpec((None, CP, NFLAT), lambda b: (b, 0, 0)),   # x (one block)
            pl.BlockSpec((1, NFLAT), lambda b: (0, 0)),             # interior mask
            pl.BlockSpec((CP, 9 * CP), lambda b: (0, 0)),           # w1 packed (bf16)
            pl.BlockSpec((CP, 1), lambda b: (0, 0)),                # b1
            pl.BlockSpec((CP, 9 * CP), lambda b: (0, 0)),           # w2 packed (bf16)
            pl.BlockSpec((CP, 1), lambda b: (0, 0)),                # b2
        ],
        out_specs=pl.BlockSpec((None, ROWS, NFLAT), lambda b: (b, 0, 0)),
        compiler_params=pltpu.CompilerParams(
            dimension_semantics=("parallel",)),                     # megacore / v7x
    )

    @jax.jit
    def fwd(x):
        xf = x.astype(jnp.float32)
        xpad = jnp.pad(xf, ((0, 0), (0, 0), (1, 1), (1, 1)))        # (B, C, Hp, Wp)
        xg = xpad.reshape(NB, ROWS, NPAD)                           # fold images
        xblk = jnp.pad(xg, ((0, 0), (0, CP - ROWS), (0, NFLAT - NPAD)))
        out = call(xblk, mask, w1p, b1p, w2p, b2p)                  # (NB, ROWS, NFLAT)
        out = out[..., :NPAD].reshape(B, C, Hp, Wp)[:, :, 1:-1, 1:-1]
        return out.astype(x.dtype)

    return fwd


def _init_conv_params(key, cin, cout, k=3):
    # Deterministic init mimicking PyTorch Conv2d default (uniform +- 1/sqrt(fan_in)).
    k1, k2 = jax.random.split(key)
    bound = 1.0 / (cin * k * k) ** 0.5
    w = jax.random.uniform(k1, (k, k, cin, cout), minval=-bound, maxval=bound,
                           dtype=jnp.float32)
    b = jax.random.uniform(k2, (cout,), minval=-bound, maxval=bound,
                           dtype=jnp.float32)
    return w, b


def _reference_forward(x_nchw, w1, b1, w2, b2):
    # Pure-JAX reference (XLA conv) for correctness checking.
    def conv(x, w, b):
        y = lax.conv_general_dilated(
            x, w, window_strides=(1, 1), padding="SAME",
            dimension_numbers=("NCHW", "HWIO", "NCHW"),
            precision=lax.Precision.HIGHEST)
        return y + b.reshape(1, -1, 1, 1)

    y = jax.nn.leaky_relu(conv(x_nchw, w1, b1), negative_slope=0.2)
    y = jax.nn.leaky_relu(conv(y, w2, b2), negative_slope=0.2)
    return jax.nn.sigmoid(y) * x_nchw


if __name__ == "__main__":
    key = jax.random.PRNGKey(0)
    kx, k1, k2 = jax.random.split(key, 3)

    B, C, H, W = 2, 4, 16, 16
    x = jax.random.normal(kx, (B, C, H, W), dtype=jnp.float32)

    w1, b1 = _init_conv_params(k1, C, C)
    w2, b2 = _init_conv_params(k2, C, C)

    fwd = make_eca_forward(B, C, H, W, w1, b1, w2, b2)
    out = jax.block_until_ready(fwd(x))
    ref = jax.block_until_ready(_reference_forward(x, w1, b1, w2, b2))

    assert out.shape == (B, C, H, W)
    err = float(jnp.max(jnp.abs(out - ref)))
    # bf16 MXU inputs -> ~1e-3 level error; 1e-2 tolerance is ample headroom.
    assert jnp.allclose(out, ref, atol=1e-2, rtol=1e-2), f"max abs err = {err}"

    print("KERNEL_OK")
</pallas_src>

<mosaic_0001>
module attributes {stable_mosaic.version = 11 : i64} {
  func.func @kernel(%arg0: i32, %arg1: memref<1x8x384xf32, #tpu.memory_space<vmem>>, %arg2: memref<1x384xf32, #tpu.memory_space<vmem>>, %arg3: memref<8x72xbf16, #tpu.memory_space<vmem>>, %arg4: memref<8x1xf32, #tpu.memory_space<vmem>>, %arg5: memref<8x72xbf16, #tpu.memory_space<vmem>>, %arg6: memref<8x1xf32, #tpu.memory_space<vmem>>, %arg7: memref<1x8x384xf32, #tpu.memory_space<vmem>>) attributes {dimension_semantics = [#tpu.dimension_semantics<parallel>], iteration_bounds = array<i64: 1>, scalar_prefetch = 0 : i64, scratch_operands = 0 : i64, tpu.core_type = #tpu.core_type<tc>, window_params = [{transform_indices = @transform_0, window_bounds = array<i64: 1, 8, 384>}, {pipeline_mode = #tpu.pipeline_mode<synchronous>, transform_indices = @transform_1, window_bounds = array<i64: 1, 384>}, {pipeline_mode = #tpu.pipeline_mode<synchronous>, transform_indices = @transform_2, window_bounds = array<i64: 8, 72>}, {pipeline_mode = #tpu.pipeline_mode<synchronous>, transform_indices = @transform_3, window_bounds = array<i64: 8, 1>}, {pipeline_mode = #tpu.pipeline_mode<synchronous>, transform_indices = @transform_4, window_bounds = array<i64: 8, 72>}, {pipeline_mode = #tpu.pipeline_mode<synchronous>, transform_indices = @transform_5, window_bounds = array<i64: 8, 1>}, {transform_indices = @transform_6, window_bounds = array<i64: 1, 8, 384>}]} {
    %c0 = arith.constant 0 : index
    %c0_0 = arith.constant 0 : index
    %c0_1 = arith.constant 0 : index
    %0 = vector.load %arg1[%c0, %c0_0, %c0_1] : memref<1x8x384xf32, #tpu.memory_space<vmem>>, vector<1x8x384xf32>
    %1 = vector.shape_cast %0 : vector<1x8x384xf32> to vector<8x384xf32>
    %c0_2 = arith.constant 0 : index
    %c0_3 = arith.constant 0 : index
    %2 = vector.load %arg2[%c0_2, %c0_3] : memref<1x384xf32, #tpu.memory_space<vmem>>, vector<1x384xf32>
    %c19_i32 = arith.constant 19 : i32
    %3 = tpu.dynamic_rotate %1 by %c19_i32 dim 1 : vector<8x384xf32>, i32 -> vector<8x384xf32>
    %c18_i32 = arith.constant 18 : i32
    %4 = tpu.dynamic_rotate %1 by %c18_i32 dim 1 : vector<8x384xf32>, i32 -> vector<8x384xf32>
    %c17_i32 = arith.constant 17 : i32
    %5 = tpu.dynamic_rotate %1 by %c17_i32 dim 1 : vector<8x384xf32>, i32 -> vector<8x384xf32>
    %c1_i32 = arith.constant 1 : i32
    %6 = tpu.dynamic_rotate %1 by %c1_i32 dim 1 : vector<8x384xf32>, i32 -> vector<8x384xf32>
    %c383_i32 = arith.constant 383 : i32
    %7 = tpu.dynamic_rotate %1 by %c383_i32 dim 1 : vector<8x384xf32>, i32 -> vector<8x384xf32>
    %c367_i32 = arith.constant 367 : i32
    %8 = tpu.dynamic_rotate %1 by %c367_i32 dim 1 : vector<8x384xf32>, i32 -> vector<8x384xf32>
    %c366_i32 = arith.constant 366 : i32
    %9 = tpu.dynamic_rotate %1 by %c366_i32 dim 1 : vector<8x384xf32>, i32 -> vector<8x384xf32>
    %c365_i32 = arith.constant 365 : i32
    %10 = tpu.dynamic_rotate %1 by %c365_i32 dim 1 : vector<8x384xf32>, i32 -> vector<8x384xf32>
    %11 = tpu.concatenate %3, %4, %5, %6, %1, %7, %8, %9, %10 in 0 : vector<8x384xf32>, vector<8x384xf32>, vector<8x384xf32>, vector<8x384xf32>, vector<8x384xf32>, vector<8x384xf32>, vector<8x384xf32>, vector<8x384xf32>, vector<8x384xf32> -> vector<72x384xf32>
    %c0_4 = arith.constant 0 : index
    %c0_5 = arith.constant 0 : index
    %12 = vector.load %arg3[%c0_4, %c0_5] : memref<8x72xbf16, #tpu.memory_space<vmem>>, vector<8x72xbf16>
    %13 = arith.truncf %11 : vector<72x384xf32> to vector<72x384xbf16>
    %cst = arith.constant dense<0.000000e+00> : vector<8x384xf32>
    %14 = tpu.matmul %12, %13, %cst {dimension_numbers = #tpu.dot_dimension_numbers<[1], [0], [0], [1], [0, 0, 1, 1], [], []>} : vector<8x72xbf16>, vector<72x384xbf16>, vector<8x384xf32> -> vector<8x384xf32>
    %c0_6 = arith.constant 0 : index
    %c0_7 = arith.constant 0 : index
    %15 = vector.load %arg4[%c0_6, %c0_7] : memref<8x1xf32, #tpu.memory_space<vmem>>, vector<8x1xf32>
    %16 = vector.broadcast %15 : vector<8x1xf32> to vector<8x384xf32>
    %17 = arith.addf %14, %16 : vector<8x384xf32>
    %cst_8 = arith.constant 0.000000e+00 : f32
    %18 = vector.broadcast %cst_8 : f32 to vector<8x384xf32>
    %19 = arith.cmpf oge, %17, %18 : vector<8x384xf32>
    %cst_9 = arith.constant 2.000000e-01 : f32
    %20 = vector.broadcast %cst_9 : f32 to vector<8x384xf32>
    %21 = arith.mulf %20, %17 : vector<8x384xf32>
    %22 = arith.select %19, %17, %21 : vector<8x384xi1>, vector<8x384xf32>
    %23 = vector.broadcast %2 : vector<1x384xf32> to vector<8x384xf32>
    %24 = arith.mulf %22, %23 : vector<8x384xf32>
    %c19_i32_10 = arith.constant 19 : i32
    %25 = tpu.dynamic_rotate %24 by %c19_i32_10 dim 1 : vector<8x384xf32>, i32 -> vector<8x384xf32>
    %c18_i32_11 = arith.constant 18 : i32
    %26 = tpu.dynamic_rotate %24 by %c18_i32_11 dim 1 : vector<8x384xf32>, i32 -> vector<8x384xf32>
    %c17_i32_12 = arith.constant 17 : i32
    %27 = tpu.dynamic_rotate %24 by %c17_i32_12 dim 1 : vector<8x384xf32>, i32 -> vector<8x384xf32>
    %c1_i32_13 = arith.constant 1 : i32
    %28 = tpu.dynamic_rotate %24 by %c1_i32_13 dim 1 : vector<8x384xf32>, i32 -> vector<8x384xf32>
    %c383_i32_14 = arith.constant 383 : i32
    %29 = tpu.dynamic_rotate %24 by %c383_i32_14 dim 1 : vector<8x384xf32>, i32 -> vector<8x384xf32>
    %c367_i32_15 = arith.constant 367 : i32
    %30 = tpu.dynamic_rotate %24 by %c367_i32_15 dim 1 : vector<8x384xf32>, i32 -> vector<8x384xf32>
    %c366_i32_16 = arith.constant 366 : i32
    %31 = tpu.dynamic_rotate %24 by %c366_i32_16 dim 1 : vector<8x384xf32>, i32 -> vector<8x384xf32>
    %c365_i32_17 = arith.constant 365 : i32
    %32 = tpu.dynamic_rotate %24 by %c365_i32_17 dim 1 : vector<8x384xf32>, i32 -> vector<8x384xf32>
    %33 = tpu.concatenate %25, %26, %27, %28, %24, %29, %30, %31, %32 in 0 : vector<8x384xf32>, vector<8x384xf32>, vector<8x384xf32>, vector<8x384xf32>, vector<8x384xf32>, vector<8x384xf32>, vector<8x384xf32>, vector<8x384xf32>, vector<8x384xf32> -> vector<72x384xf32>
    %c0_18 = arith.constant 0 : index
    %c0_19 = arith.constant 0 : index
    %34 = vector.load %arg5[%c0_18, %c0_19] : memref<8x72xbf16, #tpu.memory_space<vmem>>, vector<8x72xbf16>
    %35 = arith.truncf %33 : vector<72x384xf32> to vector<72x384xbf16>
    %cst_20 = arith.constant dense<0.000000e+00> : vector<8x384xf32>
    %36 = tpu.matmul %34, %35, %cst_20 {dimension_numbers = #tpu.dot_dimension_numbers<[1], [0], [0], [1], [0, 0, 1, 1], [], []>} : vector<8x72xbf16>, vector<72x384xbf16>, vector<8x384xf32> -> vector<8x384xf32>
    %c0_21 = arith.constant 0 : index
    %c0_22 = arith.constant 0 : index
    %37 = vector.load %arg6[%c0_21, %c0_22] : memref<8x1xf32, #tpu.memory_space<vmem>>, vector<8x1xf32>
    %38 = vector.broadcast %37 : vector<8x1xf32> to vector<8x384xf32>
    %39 = arith.addf %36, %38 : vector<8x384xf32>
    %cst_23 = arith.constant 0.000000e+00 : f32
    %40 = vector.broadcast %cst_23 : f32 to vector<8x384xf32>
    %41 = arith.cmpf oge, %39, %40 : vector<8x384xf32>
    %cst_24 = arith.constant 2.000000e-01 : f32
    %42 = vector.broadcast %cst_24 : f32 to vector<8x384xf32>
    %43 = arith.mulf %42, %39 : vector<8x384xf32>
    %44 = arith.select %41, %39, %43 : vector<8x384xi1>, vector<8x384xf32>
    %45 = arith.negf %44 : vector<8x384xf32>
    %46 = math.exp %45 : vector<8x384xf32>
    %cst_25 = arith.constant 1.000000e+00 : f32
    %47 = vector.broadcast %cst_25 : f32 to vector<8x384xf32>
    %48 = arith.addf %47, %46 : vector<8x384xf32>
    %49 = arith.divf %47, %48 : vector<8x384xf32>
    %50 = arith.mulf %49, %1 : vector<8x384xf32>
    %c0_26 = arith.constant 0 : index
    %c0_27 = arith.constant 0 : index
    %c0_28 = arith.constant 0 : index
    %51 = vector.load %arg7[%c0_26, %c0_27, %c0_28] : memref<1x8x384xf32, #tpu.memory_space<vmem>>, vector<1x8x384xf32>
    %52 = vector.shape_cast %51 : vector<1x8x384xf32> to vector<8x384xf32>
    %53 = vector.shape_cast %50 : vector<8x384xf32> to vector<1x8x384xf32>
    tpu.vector_store %arg7[%c0_26, %c0_27, %c0_28], %53 {strides = array<i32>} : memref<1x8x384xf32, #tpu.memory_space<vmem>>, vector<1x8x384xf32>,
    return
  }
  func.func @transform_0(%arg0: i32) -> (i32, i32, i32) {
    %c0_i32 = arith.constant 0 : i32
    %c0_i32_0 = arith.constant 0 : i32
    %c0_i32_1 = arith.constant 0 : i32
    return %arg0, %c0_i32, %c0_i32_0 : i32, i32, i32
  }
  func.func @transform_1(%arg0: i32) -> (i32, i32) {
    %c0_i32 = arith.constant 0 : i32
    %c0_i32_0 = arith.constant 0 : i32
    %c0_i32_1 = arith.constant 0 : i32
    return %c0_i32, %c0_i32_0 : i32, i32
  }
  func.func @transform_2(%arg0: i32) -> (i32, i32) {
    %c0_i32 = arith.constant 0 : i32
    %c0_i32_0 = arith.constant 0 : i32
    %c0_i32_1 = arith.constant 0 : i32
    return %c0_i32, %c0_i32_0 : i32, i32
  }
  func.func @transform_3(%arg0: i32) -> (i32, i32) {
    %c0_i32 = arith.constant 0 : i32
    %c0_i32_0 = arith.constant 0 : i32
    %c0_i32_1 = arith.constant 0 : i32
    return %c0_i32, %c0_i32_0 : i32, i32
  }
  func.func @transform_4(%arg0: i32) -> (i32, i32) {
    %c0_i32 = arith.constant 0 : i32
    %c0_i32_0 = arith.constant 0 : i32
    %c0_i32_1 = arith.constant 0 : i32
    return %c0_i32, %c0_i32_0 : i32, i32
  }
  func.func @transform_5(%arg0: i32) -> (i32, i32) {
    %c0_i32 = arith.constant 0 : i32
    %c0_i32_0 = arith.constant 0 : i32
    %c0_i32_1 = arith.constant 0 : i32
    return %c0_i32, %c0_i32_0 : i32, i32
  }
  func.func @transform_6(%arg0: i32) -> (i32, i32, i32) {
    %c0_i32 = arith.constant 0 : i32
    %c0_i32_0 = arith.constant 0 : i32
    %c0_i32_1 = arith.constant 0 : i32
    return %arg0, %c0_i32, %c0_i32_0 : i32, i32, i32
  }
}

</mosaic_0001>

<llo_original>
// kernel: fwd.1
$region0: #{fwd.1}
  #allocation0 [shape = 'u32[]', space=smem, size = 0x4, offset = 0x4, fixed_abs, tag = 'smem constant byte address 0x4 - core index']
  #allocation1 [shape = 'u32[144,128]{1,0:T(1,128)}', space=vmem, size = 0x12000, scoped, tag = 'internal scratch']
  %s0 = inlined_call_operand.vmem [shape: f32[1,8,384], index: 0, kind: input, shape index: {}]
  %s1 = inlined_call_operand.vmem [shape: f32[1,384], index: 1, kind: input, shape index: {}]
  %s2 = inlined_call_operand.vmem [shape: bf16[8,72], index: 2, kind: input, shape index: {}]
  %s3 = inlined_call_operand.vmem [shape: f32[8,1], index: 3, kind: input, shape index: {}]
  %s4 = inlined_call_operand.vmem [shape: bf16[8,72], index: 4, kind: input, shape index: {}]
  %s5 = inlined_call_operand.vmem [shape: f32[8,1], index: 5, kind: input, shape index: {}]
  %s6 = inlined_call_operand.vmem [shape: f32[1,8,384], index: 6, kind: output, shape index: {}]
  %s7 = sld [smem:[#allocation0]]
  $region34: #{fwd.1} parent=0
    _
  %s9 = ssub.s32 1, %s7
  %s10 = scalar_select 0, %s9, %s7
  // Predicated region
  $region2: #{fwd.1} parent=0 // pred_check
    _
  $region3: #{fwd.1} parent=0 // pred_check_branch
    %12 = sbr.rel (0) target = $region5
  $region4: #{fwd.1} parent=0 // pred_region
    _
  $region5: #{fwd.1} parent=0 // pred_fallthru
    _
  // Predicated region
  $region6: #{fwd.1} parent=0 // pred_check
    _
  $region7: #{fwd.1} parent=0 // pred_check_branch
    %14 = sbr.rel (0) target = $region9
  $region8: #{fwd.1} parent=0 // pred_region
    _
  $region9: #{fwd.1} parent=0 // pred_fallthru
    _
  // Predicated region
  $region10: #{fwd.1} parent=0 // pred_check
    _
  $region11: #{fwd.1} parent=0 // pred_check_branch
    %16 = sbr.rel (0) target = $region13
  $region12: #{fwd.1} parent=0 // pred_region
    _
  $region13: #{fwd.1} parent=0 // pred_fallthru
    _
  // Predicated region
  $region14: #{fwd.1} parent=0 // pred_check
    _
  $region15: #{fwd.1} parent=0 // pred_check_branch
    %18 = sbr.rel (0) target = $region17
  $region16: #{fwd.1} parent=0 // pred_region
    _
  $region17: #{fwd.1} parent=0 // pred_fallthru
    _
  // Predicated region
  $region18: #{fwd.1} parent=0 // pred_check
    _
  $region19: #{fwd.1} parent=0 // pred_check_branch
    %20 = sbr.rel (0) target = $region21
  $region20: #{fwd.1} parent=0 // pred_region
    _
  $region21: #{fwd.1} parent=0 // pred_fallthru
    _
  // Predicated region
  $region22: #{fwd.1} parent=0 // pred_check
    _
  $region23: #{fwd.1} parent=0 // pred_check_branch
    %22 = sbr.rel (0) target = $region25
  $region24: #{fwd.1} parent=0 // pred_region
    _
  $region25: #{fwd.1} parent=0 // pred_fallthru
    _
  %v24 = vld [vmem:[%s0] sm:$0xff]
  %v25 = vld [vmem:[%s0 + $0x8] sm:$0xff]
  %v26 = vld [vmem:[%s0 + $0x10] sm:$0xff]
  %v27 = vld [vmem:[%s1] sm:$0x7]
  %28 = vrot.lane.b32.xlu0 %v24, 19
  %v29 = vpop.permute.xlu0 %28
  %30 = vrot.lane.b32.xlu0 %v25, 19
  %v31 = vpop.permute.xlu0 %30
  %32 = vrot.lane.b32.xlu0 %v26, 19
  %v33 = vpop.permute.xlu0 %32
  %v34 = vlaneseq
  %v35 = vand.u32 %v34, 127
  %vm36 = vcmp.lt.s32.totalorder %v35, 19
  %v37 = vsel %vm36, %v31, %v33
  %v38 = vsel %vm36, %v29, %v31
  %v39 = vsel %vm36, %v33, %v29
  %40 = vrot.lane.b32.xlu0 %v24, 18
  %v41 = vpop.permute.xlu0 %40
  %42 = vrot.lane.b32.xlu0 %v25, 18
  %v43 = vpop.permute.xlu0 %42
  %44 = vrot.lane.b32.xlu0 %v26, 18
  %v45 = vpop.permute.xlu0 %44
  %vm46 = vcmp.lt.s32.totalorder %v35, 18
  %v47 = vsel %vm46, %v43, %v45
  %v48 = vsel %vm46, %v41, %v43
  %v49 = vsel %vm46, %v45, %v41
  %50 = vrot.lane.b32.xlu0 %v24, 17
  %v51 = vpop.permute.xlu0 %50
  %52 = vrot.lane.b32.xlu0 %v25, 17
  %v53 = vpop.permute.xlu0 %52
  %54 = vrot.lane.b32.xlu0 %v26, 17
  %v55 = vpop.permute.xlu0 %54
  %vm56 = vcmp.lt.s32.totalorder %v35, 17
  %v57 = vsel %vm56, %v53, %v55
  %v58 = vsel %vm56, %v51, %v53
  %v59 = vsel %vm56, %v55, %v51
  %60 = vrot.lane.b32.xlu0 %v24, 1
  %v61 = vpop.permute.xlu0 %60
  %62 = vrot.lane.b32.xlu0 %v25, 1
  %v63 = vpop.permute.xlu0 %62
  %64 = vrot.lane.b32.xlu0 %v26, 1
  %v65 = vpop.permute.xlu0 %64
  %vm66 = vcmp.lt.s32.totalorder %v35, 1
  %v67 = vsel %vm66, %v63, %v65
  %v68 = vsel %vm66, %v61, %v63
  %v69 = vsel %vm66, %v65, %v61
  %70 = vrot.lane.b32.xlu0 %v24, 127
  %v71 = vpop.permute.xlu0 %70
  %72 = vrot.lane.b32.xlu0 %v25, 127
  %v73 = vpop.permute.xlu0 %72
  %74 = vrot.lane.b32.xlu0 %v26, 127
  %v75 = vpop.permute.xlu0 %74
  %vm76 = vcmp.lt.s32.totalorder %v35, 127
  %v77 = vsel %vm76, %v73, %v75
  %v78 = vsel %vm76, %v71, %v73
  %v79 = vsel %vm76, %v75, %v71
  %80 = vrot.lane.b32.xlu0 %v24, 111
  %v81 = vpop.permute.xlu0 %80
  %82 = vrot.lane.b32.xlu0 %v25, 111
  %v83 = vpop.permute.xlu0 %82
  %84 = vrot.lane.b32.xlu0 %v26, 111
  %v85 = vpop.permute.xlu0 %84
  %vm86 = vcmp.lt.s32.totalorder %v35, 111
  %v87 = vsel %vm86, %v83, %v85
  %v88 = vsel %vm86, %v81, %v83
  %v89 = vsel %vm86, %v85, %v81
  %90 = vrot.lane.b32.xlu0 %v24, 110
  %v91 = vpop.permute.xlu0 %90
  %92 = vrot.lane.b32.xlu0 %v25, 110
  %v93 = vpop.permute.xlu0 %92
  %94 = vrot.lane.b32.xlu0 %v26, 110
  %v95 = vpop.permute.xlu0 %94
  %vm96 = vcmp.lt.s32.totalorder %v35, 110
  %v97 = vsel %vm96, %v93, %v95
  %v98 = vsel %vm96, %v91, %v93
  %v99 = vsel %vm96, %v95, %v91
  %100 = vrot.lane.b32.xlu0 %v24, 109
  %v101 = vpop.permute.xlu0 %100
  %102 = vrot.lane.b32.xlu0 %v25, 109
  %v103 = vpop.permute.xlu0 %102
  %104 = vrot.lane.b32.xlu0 %v26, 109
  %v105 = vpop.permute.xlu0 %104
  %vm106 = vcmp.lt.s32.totalorder %v35, 109
  %v107 = vsel %vm106, %v103, %v105
  %v108 = vsel %vm106, %v101, %v103
  %v109 = vsel %vm106, %v105, %v101
  %v110 = vld [vmem:[%s2] sm:$0xf]
  %v111 = vpack.c.bf16 %v49, %v39
  %v112 = vpack.c.bf16 %v48, %v38
  %v113 = vpack.c.bf16 %v47, %v37
  %v114 = vpack.c.bf16 %v69, %v59
  %v115 = vpack.c.bf16 %v68, %v58
  %v116 = vpack.c.bf16 %v67, %v57
  %v117 = vpack.c.bf16 %v78, %v24
  %v118 = vpack.c.bf16 %v77, %v25
  %v119 = vpack.c.bf16 %v79, %v26
  %v120 = vpack.c.bf16 %v98, %v88
  %v121 = vpack.c.bf16 %v97, %v87
  %v122 = vpack.c.bf16 %v99, %v89
  %v123 = vpack.c.bf16 %v108, %v108
  %v124 = vpack.c.bf16 %v107, %v107
  %v125 = vpack.c.bf16 %v109, %v109
  %v126 = vld [vmem:[%s3] sm:$0xff]
  %128 = vset.pattern.permute.xlu0 0
  %129 = vperm.xlu0 %128, %v126
  %v130 = vpop.permute.xlu0 %129
  %vm132 = vcmask 588800
  %v134 = vsel %vm132, %v110, 0
  %vm136 = vcmask 1043456
  %v138 = vsel %vm136, %v123, 0
  %v141 = vsel %vm136, %v124, 0
  %v144 = vsel %vm136, %v125, 0
  %146 = vmatprep.subr.bf16.mxu0 0
  %147 = vmatpush1.bf16.msra.mxu0 0
  %148 = vmatprep.subr.bf16.mxu0 0
  %149 = vmatpush1.bf16.msra.mxu0 0
  %150 = vmatprep.subr.bf16.mxu0 0
  %151 = vmatpush1.bf16.msra.mxu0 0
  %152 = vmatprep.subr.bf16.mxu0 %v141
  %153 = vmatpush1.bf16.msra.mxu0 %v138
  %154 = vmatprep.subr.bf16.mxu0 %v121
  %155 = vmatpush1.bf16.msra.mxu0 %v120
  %156 = vmatprep.subr.bf16.mxu0 %v118
  %157 = vmatpush1.bf16.msra.mxu0 %v117
  %158 = vmatprep.subr.bf16.mxu0 %v115
  %159 = vmatpush1.bf16.msra.mxu0 %v114
  %160 = vmatprep.subr.bf16.mxu0 %v112
  %161 = vmatpush1.bf16.msra.mxu0 %v111
  %162 = vmatprep.subr.bf16.mxu0 0
  %163 = vmatpush2.bf16.msra.mxu0 0
  %164 = vmatprep.subr.bf16.mxu0 0
  %165 = vmatpush2.bf16.msra.mxu0 0
  %166 = vmatprep.subr.bf16.mxu0 0
  %167 = vmatpush2.bf16.msra.mxu0 0
  %168 = vmatprep.subr.bf16.mxu0 0
  %169 = vmatpush2.bf16.msra.mxu0 0
  %170 = vmatprep.subr.bf16.mxu0 0
  %171 = vmatpush2.bf16.msra.mxu0 0
  %172 = vmatprep.subr.bf16.mxu0 0
  %173 = vmatpush2.bf16.msra.mxu0 0
  %174 = vmatprep.subr.bf16.mxu0 0
  %175 = vmatpush2.bf16.msra.mxu0 0
  %176 = vmatprep.subr.bf16.mxu0 0
  %177 = vmatpush2.bf16.msra.mxu0 0
  %178 = vmatprep.mubr.bf16.mxu0 0
  %179 = vmatmul.mubr.bf16.gmra.mxu0 %v134
  %v180 = vpop.f32.mrf.mxu0
  %v181 = vadd.f32 %v130, %v180
  %v182 = vpop.f32.mrf.mxu0
  %v183 = vadd.f32 %v130, %v182
  %v184 = vpop.f32.mrf.mxu0
  %v185 = vpop.f32.mrf.mxu0
  %186 = vdwg.mxu0
  %187 = vmatprep.subr.bf16.mxu0 0
  %188 = vmatpush1.bf16.msra.mxu0 0
  %189 = vmatprep.subr.bf16.mxu0 0
  %190 = vmatpush1.bf16.msra.mxu0 0
  %191 = vmatprep.subr.bf16.mxu0 0
  %192 = vmatpush1.bf16.msra.mxu0 0
  %193 = vmatprep.subr.bf16.mxu0 0
  %194 = vmatpush1.bf16.msra.mxu0 %v144
  %195 = vmatprep.subr.bf16.mxu0 0
  %196 = vmatpush1.bf16.msra.mxu0 %v122
  %197 = vmatprep.subr.bf16.mxu0 0
  %198 = vmatpush1.bf16.msra.mxu0 %v119
  %199 = vmatprep.subr.bf16.mxu0 0
  %200 = vmatpush1.bf16.msra.mxu0 %v116
  %201 = vmatprep.subr.bf16.mxu0 0
  %202 = vmatpush1.bf16.msra.mxu0 %v113
  %203 = vmatprep.subr.bf16.mxu0 0
  %204 = vmatpush2.bf16.msra.mxu0 0
  %205 = vmatprep.subr.bf16.mxu0 0
  %206 = vmatpush2.bf16.msra.mxu0 0
  %207 = vmatprep.subr.bf16.mxu0 0
  %208 = vmatpush2.bf16.msra.mxu0 0
  %209 = vmatprep.subr.bf16.mxu0 0
  %210 = vmatpush2.bf16.msra.mxu0 0
  %211 = vmatprep.subr.bf16.mxu0 0
  %212 = vmatpush2.bf16.msra.mxu0 0
  %213 = vmatprep.subr.bf16.mxu0 0
  %214 = vmatpush2.bf16.msra.mxu0 0
  %215 = vmatprep.subr.bf16.mxu0 0
  %216 = vmatpush2.bf16.msra.mxu0 0
  %217 = vmatprep.subr.bf16.mxu0 0
  %218 = vmatpush2.bf16.msra.mxu0 0
  %219 = vmatprep.mubr.bf16.mxu0 0
  %220 = vmatmul.mubr.bf16.gmra.mxu0 %v134
  %v221 = vpop.f32.mrf.mxu0
  %v222 = vadd.f32 %v130, %v221
  %v223 = vpop.f32.mrf.mxu0
  %v224 = vpop.f32.mrf.mxu0
  %v225 = vpop.f32.mrf.mxu0
  %226 = vdwg.mxu0
  %vm227 = vcmp.ge.f32.partialorder %v181, 0.0
  %vm228 = vcmp.ge.f32.partialorder %v183, 0.0
  %vm229 = vcmp.ge.f32.partialorder %v222, 0.0
  %v230 = vmul.f32 %v181, 0.2
  %v231 = vmul.f32 %v183, 0.2
  %v232 = vmul.f32 %v222, 0.2
  %v233 = vsel %vm227, %v181, %v230
  %v234 = vsel %vm228, %v183, %v231
  %v235 = vsel %vm229, %v222, %v232
  %v237 = vlaneseq
  %v238 = vshrl.u32 %v237, 7
  %v239 = vsub.s32 0, %v238
  %v240 = vrot.slane %v27, %v239
  %v241 = vlaneseq
  %v242 = vshrl.u32 %v241, 7
  %v243 = vsub.s32 1, %v242
  %v244 = vrot.slane %v27, %v243
  %v245 = vlaneseq
  %v246 = vshrl.u32 %v245, 7
  %v247 = vsub.s32 2, %v246
  %v248 = vrot.slane %v27, %v247
  %v252 = vmul.f32 %v233, %v240
  %v253 = vmul.f32 %v234, %v244
  %v254 = vmul.f32 %v235, %v248
  %255 = vrot.lane.b32.xlu0 %v252, 19
  %v256 = vpop.permute.xlu0 %255
  %257 = vrot.lane.b32.xlu0 %v253, 19
  %v258 = vpop.permute.xlu0 %257
  %259 = vrot.lane.b32.xlu0 %v254, 19
  %v260 = vpop.permute.xlu0 %259
  %v261 = vsel %vm36, %v258, %v260
  %v262 = vsel %vm36, %v256, %v258
  %v263 = vsel %vm36, %v260, %v256
  %264 = vrot.lane.b32.xlu0 %v252, 18
  %v265 = vpop.permute.xlu0 %264
  %266 = vrot.lane.b32.xlu0 %v253, 18
  %v267 = vpop.permute.xlu0 %266
  %268 = vrot.lane.b32.xlu0 %v254, 18
  %v269 = vpop.permute.xlu0 %268
  %v270 = vsel %vm46, %v267, %v269
  %v271 = vsel %vm46, %v265, %v267
  %v272 = vsel %vm46, %v269, %v265
  %273 = vrot.lane.b32.xlu0 %v252, 17
  %v274 = vpop.permute.xlu0 %273
  %275 = vrot.lane.b32.xlu0 %v253, 17
  %v276 = vpop.permute.xlu0 %275
  %277 = vrot.lane.b32.xlu0 %v254, 17
  %v278 = vpop.permute.xlu0 %277
  %v279 = vsel %vm56, %v276, %v278
  %v280 = vsel %vm56, %v274, %v276
  %v281 = vsel %vm56, %v278, %v274
  %282 = vrot.lane.b32.xlu0 %v252, 1
  %v283 = vpop.permute.xlu0 %282
  %284 = vrot.lane.b32.xlu0 %v253, 1
  %v285 = vpop.permute.xlu0 %284
  %286 = vrot.lane.b32.xlu0 %v254, 1
  %v287 = vpop.permute.xlu0 %286
  %v288 = vsel %vm66, %v285, %v287
  %v289 = vsel %vm66, %v283, %v285
  %v290 = vsel %vm66, %v287, %v283
  %291 = vrot.lane.b32.xlu0 %v252, 127
  %v292 = vpop.permute.xlu0 %291
  %293 = vrot.lane.b32.xlu0 %v253, 127
  %v294 = vpop.permute.xlu0 %293
  %295 = vrot.lane.b32.xlu0 %v254, 127
  %v296 = vpop.permute.xlu0 %295
  %v297 = vsel %vm76, %v294, %v296
  %v298 = vsel %vm76, %v292, %v294
  %v299 = vsel %vm76, %v296, %v292
  %300 = vrot.lane.b32.xlu0 %v252, 111
  %v301 = vpop.permute.xlu0 %300
  %302 = vrot.lane.b32.xlu0 %v253, 111
  %v303 = vpop.permute.xlu0 %302
  %304 = vrot.lane.b32.xlu0 %v254, 111
  %v305 = vpop.permute.xlu0 %304
  %v306 = vsel %vm86, %v303, %v305
  %v307 = vsel %vm86, %v301, %v303
  %v308 = vsel %vm86, %v305, %v301
  %309 = vrot.lane.b32.xlu0 %v252, 110
  %v310 = vpop.permute.xlu0 %309
  %311 = vrot.lane.b32.xlu0 %v253, 110
  %v312 = vpop.permute.xlu0 %311
  %313 = vrot.lane.b32.xlu0 %v254, 110
  %v314 = vpop.permute.xlu0 %313
  %v315 = vsel %vm96, %v312, %v314
  %v316 = vsel %vm96, %v310, %v312
  %v317 = vsel %vm96, %v314, %v310
  %318 = vrot.lane.b32.xlu0 %v252, 109
  %v319 = vpop.permute.xlu0 %318
  %320 = vrot.lane.b32.xlu0 %v253, 109
  %v321 = vpop.permute.xlu0 %320
  %322 = vrot.lane.b32.xlu0 %v254, 109
  %v323 = vpop.permute.xlu0 %322
  %v324 = vsel %vm106, %v321, %v323
  %v325 = vsel %vm106, %v319, %v321
  %v326 = vsel %vm106, %v323, %v319
  %v327 = vld [vmem:[%s4] sm:$0xf]
  %v328 = vpack.c.bf16 %v272, %v263
  %v329 = vpack.c.bf16 %v271, %v262
  %v330 = vpack.c.bf16 %v270, %v261
  %v331 = vpack.c.bf16 %v290, %v281
  %v332 = vpack.c.bf16 %v289, %v280
  %v333 = vpack.c.bf16 %v288, %v279
  %v334 = vpack.c.bf16 %v298, %v252
  %v335 = vpack.c.bf16 %v297, %v253
  %v336 = vpack.c.bf16 %v299, %v254
  %v337 = vpack.c.bf16 %v316, %v307
  %v338 = vpack.c.bf16 %v315, %v306
  %v339 = vpack.c.bf16 %v317, %v308
  %v340 = vpack.c.bf16 %v325, %v325
  %v341 = vpack.c.bf16 %v324, %v324
  %v342 = vpack.c.bf16 %v326, %v326
  %v343 = vld [vmem:[%s5] sm:$0xff]
  %345 = vset.pattern.permute.xlu0 0
  %346 = vperm.xlu0 %345, %v343
  %v347 = vpop.permute.xlu0 %346
  %v350 = vsel %vm132, %v327, 0
  %v353 = vsel %vm136, %v340, 0
  %v356 = vsel %vm136, %v341, 0
  %v359 = vsel %vm136, %v342, 0
  %361 = vmatprep.subr.bf16.mxu0 0
  %362 = vmatpush1.bf16.msra.mxu0 0
  %363 = vmatprep.subr.bf16.mxu0 0
  %364 = vmatpush1.bf16.msra.mxu0 0
  %365 = vmatprep.subr.bf16.mxu0 0
  %366 = vmatpush1.bf16.msra.mxu0 0
  %367 = vmatprep.subr.bf16.mxu0 %v356
  %368 = vmatpush1.bf16.msra.mxu0 %v353
  %369 = vmatprep.subr.bf16.mxu0 %v338
  %370 = vmatpush1.bf16.msra.mxu0 %v337
  %371 = vmatprep.subr.bf16.mxu0 %v335
  %372 = vmatpush1.bf16.msra.mxu0 %v334
  %373 = vmatprep.subr.bf16.mxu0 %v332
  %374 = vmatpush1.bf16.msra.mxu0 %v331
  %375 = vmatprep.subr.bf16.mxu0 %v329
  %376 = vmatpush1.bf16.msra.mxu0 %v328
  %377 = vmatprep.subr.bf16.mxu0 0
  %378 = vmatpush2.bf16.msra.mxu0 0
  %379 = vmatprep.subr.bf16.mxu0 0
  %380 = vmatpush2.bf16.msra.mxu0 0
  %381 = vmatprep.subr.bf16.mxu0 0
  %382 = vmatpush2.bf16.msra.mxu0 0
  %383 = vmatprep.subr.bf16.mxu0 0
  %384 = vmatpush2.bf16.msra.mxu0 0
  %385 = vmatprep.subr.bf16.mxu0 0
  %386 = vmatpush2.bf16.msra.mxu0 0
  %387 = vmatprep.subr.bf16.mxu0 0
  %388 = vmatpush2.bf16.msra.mxu0 0
  %389 = vmatprep.subr.bf16.mxu0 0
  %390 = vmatpush2.bf16.msra.mxu0 0
  %391 = vmatprep.subr.bf16.mxu0 0
  %392 = vmatpush2.bf16.msra.mxu0 0
  %393 = vmatprep.mubr.bf16.mxu0 0
  %394 = vmatmul.mubr.bf16.gmra.mxu0 %v350
  %v395 = vpop.f32.mrf.mxu0
  %v396 = vadd.f32 %v347, %v395
  %v397 = vpop.f32.mrf.mxu0
  %v398 = vadd.f32 %v347, %v397
  %v399 = vpop.f32.mrf.mxu0
  %v400 = vpop.f32.mrf.mxu0
  %401 = vdwg.mxu0
  %402 = vmatprep.subr.bf16.mxu0 0
  %403 = vmatpush1.bf16.msra.mxu0 0
  %404 = vmatprep.subr.bf16.mxu0 0
  %405 = vmatpush1.bf16.msra.mxu0 0
  %406 = vmatprep.subr.bf16.mxu0 0
  %407 = vmatpush1.bf16.msra.mxu0 0
  %408 = vmatprep.subr.bf16.mxu0 0
  %409 = vmatpush1.bf16.msra.mxu0 %v359
  %410 = vmatprep.subr.bf16.mxu0 0
  %411 = vmatpush1.bf16.msra.mxu0 %v339
  %412 = vmatprep.subr.bf16.mxu0 0
  %413 = vmatpush1.bf16.msra.mxu0 %v336
  %414 = vmatprep.subr.bf16.mxu0 0
  %415 = vmatpush1.bf16.msra.mxu0 %v333
  %416 = vmatprep.subr.bf16.mxu0 0
  %417 = vmatpush1.bf16.msra.mxu0 %v330
  %418 = vmatprep.subr.bf16.mxu0 0
  %419 = vmatpush2.bf16.msra.mxu0 0
  %420 = vmatprep.subr.bf16.mxu0 0
  %421 = vmatpush2.bf16.msra.mxu0 0
  %422 = vmatprep.subr.bf16.mxu0 0
  %423 = vmatpush2.bf16.msra.mxu0 0
  %424 = vmatprep.subr.bf16.mxu0 0
  %425 = vmatpush2.bf16.msra.mxu0 0
  %426 = vmatprep.subr.bf16.mxu0 0
  %427 = vmatpush2.bf16.msra.mxu0 0
  %428 = vmatprep.subr.bf16.mxu0 0
  %429 = vmatpush2.bf16.msra.mxu0 0
  %430 = vmatprep.subr.bf16.mxu0 0
  %431 = vmatpush2.bf16.msra.mxu0 0
  %432 = vmatprep.subr.bf16.mxu0 0
  %433 = vmatpush2.bf16.msra.mxu0 0
  %434 = vmatprep.mubr.bf16.mxu0 0
  %435 = vmatmul.mubr.bf16.gmra.mxu0 %v350
  %v436 = vpop.f32.mrf.mxu0
  %v437 = vadd.f32 %v347, %v436
  %v438 = vpop.f32.mrf.mxu0
  %v439 = vpop.f32.mrf.mxu0
  %v440 = vpop.f32.mrf.mxu0
  %441 = vdwg.mxu0
  %vm442 = vcmp.ge.f32.partialorder %v396, 0.0
  %vm443 = vcmp.ge.f32.partialorder %v398, 0.0
  %vm444 = vcmp.ge.f32.partialorder %v437, 0.0
  %v445 = vmul.f32 %v396, 0.2
  %v446 = vmul.f32 %v398, 0.2
  %v447 = vmul.f32 %v437, 0.2
  %v448 = vsel %vm442, %v396, %v445
  %v449 = vsel %vm443, %v398, %v446
  %v450 = vsel %vm444, %v437, %v447
  %v451 = vxor.u32 %v448, 2147483648
  %v452 = vxor.u32 %v449, 2147483648
  %v453 = vxor.u32 %v450, 2147483648
  %v454 = vmul.f32 %v451, 1.442695
  %v455 = vpow.pop %v454
  %v456 = vmul.f32 %v452, 1.442695
  %v457 = vpow.pop %v456
  %v458 = vmul.f32 %v453, 1.442695
  %v459 = vpow.pop %v458
  %v460 = vadd.f32 %v455, 1.0
  %v461 = vadd.f32 %v457, 1.0
  %v462 = vadd.f32 %v459, 1.0
  %v463 = vrcp.pop %v460
  %v464 = vmul.f32 1.0, %v463
  %v465 = vrcp.pop %v461
  %v466 = vmul.f32 1.0, %v465
  %v467 = vrcp.pop %v462
  %v468 = vmul.f32 1.0, %v467
  %v469 = vmul.f32 %v464, %v24
  %v470 = vmul.f32 %v466, %v25
  %v471 = vmul.f32 %v468, %v26
  %472 = vst [vmem:[%s6] sm:$0xff] %v469
  %473 = vst [vmem:[%s6 + $0x8] sm:$0xff] %v470
  %474 = vst [vmem:[%s6 + $0x10] sm:$0xff] %v471
  // Predicated region
  $region26: #{fwd.1} parent=0 // pred_check
    _
  $region27: #{fwd.1} parent=0 // pred_check_branch
    %476 = sbr.rel (0) target = $region29
  $region28: #{fwd.1} parent=0 // pred_region
    _
  $region29: #{fwd.1} parent=0 // pred_fallthru
    _
  // Predicated region
  $region30: #{fwd.1} parent=0 // pred_check
    _
  $region31: #{fwd.1} parent=0 // pred_check_branch
    %478 = sbr.rel (0) target = $region33
  $region32: #{fwd.1} parent=0 // pred_region
    _
  $region33: #{fwd.1} parent=0 // pred_fallthru
    _

</llo_original>
